<compile_context>
chip_gen: v7x
topology: tpu7x:2x2x1
jax: 0.10.0
libtpu: 0.0.40
codegen_flags: <defaults>
</compile_context>

<pallas_src>
import functools

import jax
import jax.numpy as jnp
from jax.experimental import pallas as pl
from jax.experimental.pallas import tpu as pltpu

LANES = 128
SUBLANES = 8
MAX_TILE_ROWS = 8192            # (8192, 128) f32 block = 4 MiB per input
CHUNK_ROWS = 1024               # in-kernel VPU chunk: bounds temporaries ~2 MiB
VMEM_LIMIT_BYTES = 32 * 1024 * 1024


@functools.lru_cache(maxsize=None)
def _guess_num_tensorcores() -> int:
    """2 for megacore / v7x-class parts, 1 for single-TC parts (v5e/v6e)."""
    try:
        kind = jax.devices()[0].device_kind.lower()
    except Exception:  # pragma: no cover - conservative fallback
        return 1
    single_core_markers = ("v2", "v3", "lite", "v5e", "v6e")
    if any(m in kind for m in single_core_markers):
        return 1
    return 2


def _masked_l1_kernel(pred_ref, tgt_ref, sum_ref, cnt_ref, *,
                      tile_rows, chunk_rows, tiles_per_split, total_tiles,
                      n_rows, needs_tail_mask):
    i = pl.program_id(1)

    # Output blocks are VMEM-resident across the (arbitrary) i axis; zero them
    # on the first visit and accumulate directly into them.
    @pl.when(i == 0)
    def _init():
        sum_ref[...] = jnp.zeros_like(sum_ref)
        cnt_ref[...] = jnp.zeros_like(cnt_ref)

    tile_idx = pl.program_id(0) * tiles_per_split + i
    tile_row0 = tile_idx * tile_rows          # row-scale index math only
    n_chunks = tile_rows // chunk_rows

    def accumulate(apply_row_mask):
        def chunk_partial(c, acc):
            acc_s, acc_c = acc
            start = c * chunk_rows
            r0 = start if isinstance(start, int) else pl.multiple_of(start, chunk_rows)
            t = tgt_ref[pl.ds(r0, chunk_rows), :].astype(jnp.float32)
            p = pred_ref[pl.ds(r0, chunk_rows), :].astype(jnp.float32)

            valid = t > 0.0
            if apply_row_mask:
                # Only the ragged last tile / clamped duplicate tiles pay for
                # this: a single row iota + compare (kernel rows are always a
                # multiple of 128 elements, so no lane mask is needed).
                row = jax.lax.broadcasted_iota(jnp.int32, (chunk_rows, LANES), 0)
                valid = jnp.logical_and(valid, (tile_row0 + start + row) < n_rows)

            diff = jnp.where(valid, jnp.abs(t - p), 0.0)
            # Lane/sublane-preserving partial reduction (pure VPU adds).
            acc_s = acc_s + jnp.sum(
                diff.reshape(chunk_rows // SUBLANES, SUBLANES, LANES), axis=0)
            acc_c = acc_c + jnp.sum(
                valid.astype(jnp.float32).reshape(
                    chunk_rows // SUBLANES, SUBLANES, LANES), axis=0)
            return acc_s, acc_c

        init = (jnp.zeros((SUBLANES, LANES), jnp.float32),
                jnp.zeros((SUBLANES, LANES), jnp.float32))
        if n_chunks == 1:
            acc_s, acc_c = chunk_partial(0, init)
        else:
            acc_s, acc_c = jax.lax.fori_loop(0, n_chunks, chunk_partial, init)

        sum_ref[0] += acc_s
        cnt_ref[0] += acc_c

    if not needs_tail_mask:
        # Statically known: every tile is fully in-bounds and unique.
        accumulate(False)
    else:
        # Scalar tail check: interior tiles take the cheap path; the ragged
        # last tile and any clamped duplicate tile take the masked path
        # (duplicates mask to zero because tile_row0 >= n_rows).
        is_clean = (tile_row0 + tile_rows) <= n_rows

        @pl.when(is_clean)
        def _clean():
            accumulate(False)

        @pl.when(jnp.logical_not(is_clean))
        def _masked():
            accumulate(True)


@jax.jit
def masked_l1_loss(pred, target):
    assert pred.ndim == target.ndim, "inconsistent dimensions"
    assert pred.shape == target.shape, "inconsistent shapes"

    n = pred.size
    pred_f = pred.reshape(-1)
    tgt_f = target.reshape(-1)

    # Align the kernel-fed prefix to the dtype's packed sublane tile
    # (8 rows f32, 16 rows bf16, 32 rows int8/fp8), keeping sub-32-bit callers
    # on the fast layout path.
    itemsize = min(int(jnp.dtype(pred.dtype).itemsize),
                   int(jnp.dtype(target.dtype).itemsize))
    pack_rows = SUBLANES * max(1, 4 // max(1, itemsize))
    align = pack_rows * LANES

    n_main = (n // align) * align
    tail_sum = jnp.float32(0.0)
    tail_cnt = jnp.float32(0.0)

    if n_main == n:
        # Perfectly aligned: zero-copy reshape.
        pred_main, tgt_main = pred_f, tgt_f
    elif n_main == 0:
        # Tiny input (< one aligned tile): pad to a single tile (a few KiB).
        # Zero pads are excluded by the value mask (target > 0).
        pad = align - n
        pred_main = jnp.pad(pred_f, (0, pad))
        tgt_main = jnp.pad(tgt_f, (0, pad))
        n_main = align
    else:
        # Misaligned: stream the aligned prefix through the kernel and fold
        # the (< align)-element tail in with plain JAX instead of re-padding
        # the full tensors.
        pred_main, tgt_main = pred_f[:n_main], tgt_f[:n_main]
        tail_p = pred_f[n_main:].astype(jnp.float32)
        tail_t = tgt_f[n_main:].astype(jnp.float32)
        tmask = tail_t > 0
        tail_sum = jnp.sum(jnp.where(tmask, jnp.abs(tail_t - tail_p), 0.0))
        tail_cnt = jnp.sum(tmask.astype(jnp.float32))

    rows = n_main // LANES
    pred2d = pred_main.reshape(rows, LANES)
    tgt2d = tgt_main.reshape(rows, LANES)

    # Tile selection: big blocks to amortize per-grid-step overhead, with
    # tile_rows a multiple of the in-kernel chunk (so the chunk loop divides
    # evenly) and of the packed sublane count.
    if rows <= CHUNK_ROWS:
        tile_rows = rows
        chunk_rows = rows
    else:
        tile_rows = min(MAX_TILE_ROWS, (rows // CHUNK_ROWS) * CHUNK_ROWS)
        chunk_rows = CHUNK_ROWS

    total_tiles = pl.cdiv(rows, tile_rows)
    num_splits = min(_guess_num_tensorcores(), total_tiles)
    tiles_per_split = pl.cdiv(total_tiles, num_splits)
    needs_tail_mask = (total_tiles * tile_rows != rows) or \
                      (num_splits * tiles_per_split != total_tiles)

    # Clamp so a split never requests a block index past the last real tile;
    # duplicated blocks from the clamp contribute zero via the row mask.
    def in_map(s, i):
        return (jnp.minimum(s * tiles_per_split + i, total_tiles - 1), 0)

    def out_map(s, i):
        return (s, 0, 0)

    kernel = functools.partial(
        _masked_l1_kernel,
        tile_rows=tile_rows,
        chunk_rows=chunk_rows,
        tiles_per_split=tiles_per_split,
        total_tiles=total_tiles,
        n_rows=rows,
        needs_tail_mask=needs_tail_mask,
    )

    sums, cnts = pl.pallas_call(
        kernel,
        out_shape=(
            jax.ShapeDtypeStruct((num_splits, SUBLANES, LANES), jnp.float32),
            jax.ShapeDtypeStruct((num_splits, SUBLANES, LANES), jnp.float32),
        ),
        grid_spec=pltpu.PrefetchScalarGridSpec(
            num_scalar_prefetch=0,
            grid=(num_splits, tiles_per_split),
            in_specs=[
                pl.BlockSpec((tile_rows, LANES), in_map),
                pl.BlockSpec((tile_rows, LANES), in_map),
            ],
            out_specs=[
                pl.BlockSpec((1, SUBLANES, LANES), out_map),
                pl.BlockSpec((1, SUBLANES, LANES), out_map),
            ],
        ),
        compiler_params=pltpu.CompilerParams(
            dimension_semantics=("parallel", "arbitrary"),
            vmem_limit_bytes=VMEM_LIMIT_BYTES,
        ),
    )(pred2d, tgt2d)

    # Single cross-lane reduction + divide on tiny partials (0/0 -> NaN, like
    # PyTorch's mean over an empty selection).
    total_sum = jnp.sum(sums) + tail_sum
    total_cnt = jnp.sum(cnts) + tail_cnt
    return total_sum / total_cnt


def _ref_loss(pred, target):
    pred = pred.astype(jnp.float32)
    target = target.astype(jnp.float32)
    mask = target > 0
    diff = jnp.where(mask, jnp.abs(target - pred), 0.0)
    return jnp.sum(diff) / jnp.sum(mask.astype(jnp.float32))


if __name__ == "__main__":
    key = jax.random.PRNGKey(0)

    # 1) Small NCHW case matching the depth-prediction use of MaskedL1Loss.
    # 2) Misaligned case -> aligned-prefix kernel + plain-JAX tail.
    # 3) Tiny (< one aligned tile) case -> padded single-tile path.
    # 4) Larger aligned case -> multi-tile streaming, in-kernel chunk loop,
    #    ragged last tile (masked path) and the parallel split on 2-TC parts.
    # 5) bf16 case -> sub-32-bit ingest / packed-sublane alignment.
    cases = [
        ((2, 4, 16, 16), jnp.float32),
        ((2, 3, 17, 19), jnp.float32),
        ((3, 5, 7), jnp.float32),
        ((2, 8, 192, 192), jnp.float32),
        ((2, 4, 16, 16), jnp.bfloat16),
    ]

    ok = True
    for idx, (shape, dtype) in enumerate(cases):
        kp, kt = jax.random.split(jax.random.fold_in(key, idx))
        pred = jax.random.normal(kp, shape, dtype=jnp.float32).astype(dtype)
        # target: mix of positive (valid) and non-positive (invalid) entries.
        target = jax.random.normal(kt, shape, dtype=jnp.float32).astype(dtype)

        loss = jax.block_until_ready(masked_l1_loss(pred, target))
        ref = _ref_loss(pred, target)

        if not jnp.allclose(loss, ref, rtol=1e-3, atol=1e-6):
            ok = False
            print("MISMATCH", shape, str(dtype), float(loss), float(ref))

    assert ok
    print("KERNEL_OK")
</pallas_src>

<mosaic_0001>
module attributes {stable_mosaic.version = 11 : i64} {
  func.func @_masked_l1_kernel(%arg0: i32, %arg1: i32, %arg2: memref<16x128xf32, #tpu.memory_space<vmem>>, %arg3: memref<16x128xf32, #tpu.memory_space<vmem>>, %arg4: memref<1x8x128xf32, #tpu.memory_space<vmem>>, %arg5: memref<1x8x128xf32, #tpu.memory_space<vmem>>) attributes {dimension_semantics = [#tpu.dimension_semantics<parallel>, #tpu.dimension_semantics<arbitrary>], iteration_bounds = array<i64: 1, 1>, scalar_prefetch = 0 : i64, scratch_operands = 0 : i64, tpu.core_type = #tpu.core_type<tc>, window_params = [{transform_indices = @transform_0, window_bounds = array<i64: 16, 128>}, {transform_indices = @transform_1, window_bounds = array<i64: 16, 128>}, {transform_indices = @transform_2, window_bounds = array<i64: 1, 8, 128>}, {transform_indices = @transform_3, window_bounds = array<i64: 1, 8, 128>}]} {
    %c0_i32 = arith.constant 0 : i32
    %0 = arith.cmpi eq, %arg1, %c0_i32 : i32
    %1 = arith.extui %0 : i1 to i32
    %c0_i32_0 = arith.constant 0 : i32
    %2 = arith.cmpi ne, %1, %c0_i32_0 : i32
    scf.if %2 {
      %cst_21 = arith.constant 0.000000e+00 : f32
      %33 = vector.broadcast %cst_21 : f32 to vector<1x8x128xf32>
      %c0_22 = arith.constant 0 : index
      %c0_23 = arith.constant 0 : index
      %c0_24 = arith.constant 0 : index
      %34 = vector.load %arg4[%c0_22, %c0_23, %c0_24] : memref<1x8x128xf32, #tpu.memory_space<vmem>>, vector<1x8x128xf32>
      tpu.vector_store %arg4[%c0_22, %c0_23, %c0_24], %33 {strides = array<i32>} : memref<1x8x128xf32, #tpu.memory_space<vmem>>, vector<1x8x128xf32>,
      %cst_25 = arith.constant 0.000000e+00 : f32
      %35 = vector.broadcast %cst_25 : f32 to vector<1x8x128xf32>
      %c0_26 = arith.constant 0 : index
      %c0_27 = arith.constant 0 : index
      %c0_28 = arith.constant 0 : index
      %36 = vector.load %arg5[%c0_26, %c0_27, %c0_28] : memref<1x8x128xf32, #tpu.memory_space<vmem>>, vector<1x8x128xf32>
      tpu.vector_store %arg5[%c0_26, %c0_27, %c0_28], %35 {strides = array<i32>} : memref<1x8x128xf32, #tpu.memory_space<vmem>>, vector<1x8x128xf32>,
    } else {
    }
    %cst = arith.constant 0.000000e+00 : f32
    %3 = vector.broadcast %cst : f32 to vector<8x128xf32>
    %cst_1 = arith.constant 0.000000e+00 : f32
    %4 = vector.broadcast %cst_1 : f32 to vector<8x128xf32>
    %c0 = arith.constant 0 : index
    %c0_2 = arith.constant 0 : index
    %5 = vector.load %arg3[%c0, %c0_2] : memref<16x128xf32, #tpu.memory_space<vmem>>, vector<16x128xf32>
    %c0_3 = arith.constant 0 : index
    %c0_4 = arith.constant 0 : index
    %6 = vector.load %arg2[%c0_3, %c0_4] : memref<16x128xf32, #tpu.memory_space<vmem>>, vector<16x128xf32>
    %cst_5 = arith.constant 0.000000e+00 : f32
    %7 = vector.broadcast %cst_5 : f32 to vector<16x128xf32>
    %8 = arith.cmpf ogt, %5, %7 : vector<16x128xf32>
    %9 = arith.subf %5, %6 : vector<16x128xf32>
    %10 = math.absf %9 : vector<16x128xf32>
    %cst_6 = arith.constant 0.000000e+00 : f32
    %11 = vector.broadcast %cst_6 : f32 to vector<16x128xf32>
    %12 = arith.select %8, %10, %11 : vector<16x128xi1>, vector<16x128xf32>
    %13 = vector.shape_cast %12 : vector<16x128xf32> to vector<2x8x128xf32>
    %cst_7 = arith.constant dense<0.000000e+00> : vector<8x128xf32>
    %14 = vector.multi_reduction <add>, %13, %cst_7 [0] : vector<2x8x128xf32> to vector<8x128xf32>
    %15 = arith.addf %3, %14 : vector<8x128xf32>
    %16 = arith.extui %8 : vector<16x128xi1> to vector<16x128xi32>
    %17 = arith.sitofp %16 : vector<16x128xi32> to vector<16x128xf32>
    %18 = vector.shape_cast %17 : vector<16x128xf32> to vector<2x8x128xf32>
    %cst_8 = arith.constant dense<0.000000e+00> : vector<8x128xf32>
    %19 = vector.multi_reduction <add>, %18, %cst_8 [0] : vector<2x8x128xf32> to vector<8x128xf32>
    %20 = arith.addf %4, %19 : vector<8x128xf32>
    %c0_9 = arith.constant 0 : index
    %c0_10 = arith.constant 0 : index
    %c0_11 = arith.constant 0 : index
    %21 = vector.load %arg4[%c0_9, %c0_10, %c0_11] : memref<1x8x128xf32, #tpu.memory_space<vmem>>, vector<1x8x128xf32>
    %22 = vector.shape_cast %21 : vector<1x8x128xf32> to vector<8x128xf32>
    %23 = arith.addf %22, %15 : vector<8x128xf32>
    %c0_12 = arith.constant 0 : index
    %c0_13 = arith.constant 0 : index
    %c0_14 = arith.constant 0 : index
    %24 = vector.load %arg4[%c0_12, %c0_13, %c0_14] : memref<1x8x128xf32, #tpu.memory_space<vmem>>, vector<1x8x128xf32>
    %25 = vector.shape_cast %24 : vector<1x8x128xf32> to vector<8x128xf32>
    %26 = vector.shape_cast %23 : vector<8x128xf32> to vector<1x8x128xf32>
    tpu.vector_store %arg4[%c0_12, %c0_13, %c0_14], %26 {strides = array<i32>} : memref<1x8x128xf32, #tpu.memory_space<vmem>>, vector<1x8x128xf32>,
    %c0_15 = arith.constant 0 : index
    %c0_16 = arith.constant 0 : index
    %c0_17 = arith.constant 0 : index
    %27 = vector.load %arg5[%c0_15, %c0_16, %c0_17] : memref<1x8x128xf32, #tpu.memory_space<vmem>>, vector<1x8x128xf32>
    %28 = vector.shape_cast %27 : vector<1x8x128xf32> to vector<8x128xf32>
    %29 = arith.addf %28, %20 : vector<8x128xf32>
    %c0_18 = arith.constant 0 : index
    %c0_19 = arith.constant 0 : index
    %c0_20 = arith.constant 0 : index
    %30 = vector.load %arg5[%c0_18, %c0_19, %c0_20] : memref<1x8x128xf32, #tpu.memory_space<vmem>>, vector<1x8x128xf32>
    %31 = vector.shape_cast %30 : vector<1x8x128xf32> to vector<8x128xf32>
    %32 = vector.shape_cast %29 : vector<8x128xf32> to vector<1x8x128xf32>
    tpu.vector_store %arg5[%c0_18, %c0_19, %c0_20], %32 {strides = array<i32>} : memref<1x8x128xf32, #tpu.memory_space<vmem>>, vector<1x8x128xf32>,
    return
  }
  func.func @transform_0(%arg0: i32, %arg1: i32) -> (i32, i32) {
    %c1_i32 = arith.constant 1 : i32
    %0 = arith.muli %arg0, %c1_i32 : i32
    %1 = arith.addi %0, %arg1 : i32
    %c0_i32 = arith.constant 0 : i32
    %2 = arith.minsi %1, %c0_i32 : i32
    %c0_i32_0 = arith.constant 0 : i32
    %c0_i32_1 = arith.constant 0 : i32
    return %2, %c0_i32_0 : i32, i32
  }
  func.func @transform_1(%arg0: i32, %arg1: i32) -> (i32, i32) {
    %c1_i32 = arith.constant 1 : i32
    %0 = arith.muli %arg0, %c1_i32 : i32
    %1 = arith.addi %0, %arg1 : i32
    %c0_i32 = arith.constant 0 : i32
    %2 = arith.minsi %1, %c0_i32 : i32
    %c0_i32_0 = arith.constant 0 : i32
    %c0_i32_1 = arith.constant 0 : i32
    return %2, %c0_i32_0 : i32, i32
  }
  func.func @transform_2(%arg0: i32, %arg1: i32) -> (i32, i32, i32) {
    %c0_i32 = arith.constant 0 : i32
    %c0_i32_0 = arith.constant 0 : i32
    %c0_i32_1 = arith.constant 0 : i32
    return %arg0, %c0_i32, %c0_i32_0 : i32, i32, i32
  }
  func.func @transform_3(%arg0: i32, %arg1: i32) -> (i32, i32, i32) {
    %c0_i32 = arith.constant 0 : i32
    %c0_i32_0 = arith.constant 0 : i32
    %c0_i32_1 = arith.constant 0 : i32
    return %arg0, %c0_i32, %c0_i32_0 : i32, i32, i32
  }
}

</mosaic_0001>

<llo_original>
// kernel: masked_l1_loss.1
$region0: #{masked_l1_loss.1}
  #allocation0 [shape = 'u32[]', space=smem, size = 0x4, offset = 0x4, fixed_abs, tag = 'smem constant byte address 0x4 - core index']
  #allocation1 [shape = 'u32[144,128]{1,0:T(1,128)}', space=vmem, size = 0x12000, scoped, tag = 'internal scratch']
  %s0 = inlined_call_operand.vmem [shape: f32[16,128], index: 0, kind: input, shape index: {}]
  %s1 = inlined_call_operand.vmem [shape: f32[16,128], index: 1, kind: input, shape index: {}]
  %s2 = inlined_call_operand.vmem [shape: f32[1,8,128], index: 2, kind: output, shape index: {0}]
  %s3 = inlined_call_operand.vmem [shape: f32[1,8,128], index: 3, kind: output, shape index: {1}]
  %4 = xla_tuple %s2, %s3
  %s5 = sld [smem:[#allocation0]]
  $region30: #{masked_l1_loss.1} parent=0
    _
  %s7 = ssub.s32 1, %s5
  %s8 = scalar_select 0, %s7, %s5
  // Predicated region
  $region2: #{masked_l1_loss.1} parent=0 // pred_check
    _
  $region3: #{masked_l1_loss.1} parent=0 // pred_check_branch
    %10 = sbr.rel (0) target = $region5
  $region4: #{masked_l1_loss.1} parent=0 // pred_region
    %s11 = sadd.s32 0, 0
    %p12 = scmp.lt.s32.totalorder %s11, 0
    %s13 = scalar_select %p12, %s11, 0
    %s14 = smul.u32 2, %s13
    %p15 = scmp.lt.s32.totalorder %s14, 1
    %s16 = scalar_select %p15, %s14, 1
    %s17 = smul.addr %s16, 8
    %s18 = scalar_lea.vmem %s0, %s17
    %s19 = sadd.s32 0, 0
    %p20 = scmp.lt.s32.totalorder %s19, 0
    %s21 = scalar_select %p20, %s19, 0
    %s22 = smul.u32 2, %s21
  $region5: #{masked_l1_loss.1} parent=0 // pred_fallthru
    _
  // Predicated region
  $region6: #{masked_l1_loss.1} parent=0 // pred_check
    _
  $region7: #{masked_l1_loss.1} parent=0 // pred_check_branch
    %24 = sbr.rel (0) target = $region9
  $region8: #{masked_l1_loss.1} parent=0 // pred_region
    %s25 = sadd.s32 0, 0
    %p26 = scmp.lt.s32.totalorder %s25, 0
    %s27 = scalar_select %p26, %s25, 0
    %s28 = smul.u32 2, %s27
    %p29 = scmp.lt.s32.totalorder %s28, 1
    %s30 = scalar_select %p29, %s28, 1
    %s31 = smul.addr %s30, 8
    %s32 = scalar_lea.vmem %s1, %s31
    %s33 = sadd.s32 0, 0
    %p34 = scmp.lt.s32.totalorder %s33, 0
    %s35 = scalar_select %p34, %s33, 0
    %s36 = smul.u32 2, %s35
  $region9: #{masked_l1_loss.1} parent=0 // pred_fallthru
    _
  %s37 = sadd.s32 0, 0
  %p38 = scmp.lt.s32.totalorder %s37, 0
  %s39 = scalar_select %p38, %s37, 0
  %s40 = smul.u32 2, %s39
  %p41 = scmp.lt.s32.totalorder %s40, 1
  %s42 = scalar_select %p41, %s40, 1
  %s43 = smul.addr %s42, 8
  %s44 = scalar_lea.vmem %s0, %s43
  %s45 = sadd.s32 0, 0
  %p46 = scmp.lt.s32.totalorder %s45, 0
  %s47 = scalar_select %p46, %s45, 0
  %s48 = smul.u32 2, %s47
  %p49 = scmp.lt.s32.totalorder %s48, 1
  %s50 = scalar_select %p49, %s48, 1
  %s51 = smul.addr %s50, 8
  %s52 = scalar_lea.vmem %s1, %s51
  %s53 = sadd.s32 0, 0
  %p54 = scmp.lt.s32.totalorder %s53, 0
  %s55 = scalar_select %p54, %s53, 0
  %s56 = smul.u32 2, %s55
  %p57 = scmp.lt.s32.totalorder %s56, 1
  %s58 = scalar_select %p57, %s56, 1
  %s59 = smul.addr %s58, 8
  %s60 = scalar_lea.vmem %s0, %s59
  %s61 = sadd.s32 0, 0
  %p62 = scmp.lt.s32.totalorder %s61, 0
  %s63 = scalar_select %p62, %s61, 0
  %s64 = smul.u32 2, %s63
  %s65 = sadd.s32 0, 0
  %p66 = scmp.lt.s32.totalorder %s65, 0
  %s67 = scalar_select %p66, %s65, 0
  %s68 = smul.u32 2, %s67
  %p69 = scmp.lt.s32.totalorder %s68, 1
  %s70 = scalar_select %p69, %s68, 1
  %s71 = smul.addr %s70, 8
  %s72 = scalar_lea.vmem %s1, %s71
  %s73 = sadd.s32 0, 0
  %p74 = scmp.lt.s32.totalorder %s73, 0
  %s75 = scalar_select %p74, %s73, 0
  %s76 = smul.u32 2, %s75
  %p77 = scmp.eq.s32.totalorder 0, 0
  // Predicated region
  $region10: #{masked_l1_loss.1} parent=0 // pred_check
    %p78 = pneg %p77
  $region11: #{masked_l1_loss.1} parent=0 // pred_check_branch
    %80 = sbr.rel (%p78) target = $region13
  $region12: #{masked_l1_loss.1} parent=0 // pred_region
    %81 = vst [vmem:[%s2] sm:$0xff] 0.0
    %82 = vst [vmem:[%s3] sm:$0xff] 0.0
  $region13: #{masked_l1_loss.1} parent=0 // pred_fallthru
    _
  %v83 = vld [vmem:[%s72] sm:$0xff]
  %v84 = vld [vmem:[%s72 + $0x8] sm:$0xff]
  %v85 = vld [vmem:[%s60] sm:$0xff]
  %v86 = vld [vmem:[%s60 + $0x8] sm:$0xff]
  %vm87 = vcmp.gt.f32.partialorder %v83, 0.0
  %vm88 = vcmp.gt.f32.partialorder %v84, 0.0
  %v89 = vsub.f32 %v83, %v85
  %v90 = vsub.f32 %v84, %v86
  %v91 = vand.u32 2147483647, %v89
  %v92 = vand.u32 2147483647, %v90
  %v93 = vsel %vm87, %v91, 0.0
  %v94 = vsel %vm88, %v92, 0.0
  %v95 = vadd.f32 %v93, %v94
  %v96 = vadd.f32 %v95, 0.0
  %v97 = vsel %vm87, 1, 0
  %v98 = vsel %vm88, 1, 0
  %v99 = vcvt.s32.f32 %v97
  %v100 = vcvt.s32.f32 %v98
  %v101 = vadd.f32 %v99, %v100
  %v102 = vadd.f32 %v101, 0.0
  %v103 = vld [vmem:[%s2] sm:$0xff]
  %v104 = vadd.f32 %v103, %v96
  %105 = vst [vmem:[%s2] sm:$0xff] %v104
  %v106 = vld [vmem:[%s3] sm:$0xff]
  %v107 = vadd.f32 %v106, %v102
  %108 = vst [vmem:[%s3] sm:$0xff] %v107
  // Predicated region
  $region14: #{masked_l1_loss.1} parent=0 // pred_check
    _
  $region15: #{masked_l1_loss.1} parent=0 // pred_check_branch
    %110 = sbr.rel (0) target = $region17
  $region16: #{masked_l1_loss.1} parent=0 // pred_region
    _
  $region17: #{masked_l1_loss.1} parent=0 // pred_fallthru
    _
  // Predicated region
  $region18: #{masked_l1_loss.1} parent=0 // pred_check
    _
  $region19: #{masked_l1_loss.1} parent=0 // pred_check_branch
    %112 = sbr.rel (0) target = $region21
  $region20: #{masked_l1_loss.1} parent=0 // pred_region
    _
  $region21: #{masked_l1_loss.1} parent=0 // pred_fallthru
    _
  // Predicated region
  $region22: #{masked_l1_loss.1} parent=0 // pred_check
    _
  $region23: #{masked_l1_loss.1} parent=0 // pred_check_branch
    %114 = sbr.rel (0) target = $region25
  $region24: #{masked_l1_loss.1} parent=0 // pred_region
    _
  $region25: #{masked_l1_loss.1} parent=0 // pred_fallthru
    _
  // Predicated region
  $region26: #{masked_l1_loss.1} parent=0 // pred_check
    _
  $region27: #{masked_l1_loss.1} parent=0 // pred_check_branch
    %116 = sbr.rel (0) target = $region29
  $region28: #{masked_l1_loss.1} parent=0 // pred_region
    _
  $region29: #{masked_l1_loss.1} parent=0 // pred_fallthru
    _

</llo_original>
